<compile_context>
chip_gen: v5e
topology: v5e:2x2
jax: 0.10.0
libtpu: 0.0.40
codegen_flags: <defaults>
</compile_context>

<pallas_src>
import functools

import jax
import jax.numpy as jnp
from jax.experimental import pallas as pl
from jax.experimental.pallas import tpu as pltpu


# ----------------------------------------------------------------------------
# In-kernel math helpers (operate on traced values, f32)
# ----------------------------------------------------------------------------
def _ln(x, g, b, eps):
    mean = jnp.mean(x, axis=-1, keepdims=True)
    cent = x - mean
    var = jnp.mean(cent * cent, axis=-1, keepdims=True)
    return cent * jax.lax.rsqrt(var + eps) * g + b


def _gelu(y):
    # TODO(synk): HF BERT default is exact erf-GELU; tanh approximation used here.
    return 0.5 * y * (1.0 + jnp.tanh(0.7978845608028654 * (y + 0.044715 * y * y * y)))


# ----------------------------------------------------------------------------
# Pallas kernels
# ----------------------------------------------------------------------------
def _layernorm_kernel(x_ref, g_ref, b_ref, o_ref, *, eps):
    x = x_ref[0]                                   # (S, H) f32
    o_ref[0] = _ln(x, g_ref[...], b_ref[...], eps).astype(o_ref.dtype)


def _bert_layer_kernel(
    x_ref, bias_ref,
    wqkv_ref, bqkv_ref, wo_ref, bo_ref, ln1g_ref, ln1b_ref,
    w1_ref, b1_ref, w2_ref, b2_ref, ln2g_ref, ln2b_ref,
    o_ref, *, num_heads, head_dim, eps,
):
    x = x_ref[0]                                   # (S, H) f32 activations
    bias = bias_ref[0]                             # (1, S) additive mask (0 / -10000)
    S, H = x.shape
    scale = 1.0 / (head_dim ** 0.5)
    bf16 = jnp.bfloat16
    f32 = jnp.float32

    # ---- fused QKV projection: one MXU matmul, bf16 operands, f32 accumulate ----
    qkv = jnp.dot(x.astype(bf16), wqkv_ref[...], preferred_element_type=f32)
    qkv = qkv + bqkv_ref[...]                      # (S, 3H) f32

    q = qkv[:, 0:H]
    k = qkv[:, H:2 * H]
    v = qkv[:, 2 * H:3 * H]

    # ---- per-head attention; output projection accumulated head-by-head so the
    #      context never needs a lane-dim concatenate ----
    attn = jnp.zeros((S, H), f32)
    for h in range(num_heads):
        sl = slice(h * head_dim, (h + 1) * head_dim)
        qh = q[:, sl].astype(bf16)
        kh = k[:, sl].astype(bf16)
        vh = v[:, sl].astype(bf16)

        s = jnp.dot(qh, kh.T, preferred_element_type=f32) * scale + bias   # (S, S)
        m = jnp.max(s, axis=-1, keepdims=True)
        p = jnp.exp(s - m)
        p = p * pl.reciprocal(jnp.sum(p, axis=-1, keepdims=True), approx=True)

        ctx_h = jnp.dot(p.astype(bf16), vh, preferred_element_type=f32)     # (S, Dh)
        attn = attn + jnp.dot(ctx_h.astype(bf16), wo_ref[sl, :],
                              preferred_element_type=f32)

    attn = attn + bo_ref[...]

    # ---- fused residual-add + LayerNorm ----
    x = _ln(attn + x, ln1g_ref[...], ln1b_ref[...], eps)

    # ---- feed forward (GELU), fully in VMEM ----
    inter = jnp.dot(x.astype(bf16), w1_ref[...], preferred_element_type=f32) + b1_ref[...]
    inter = _gelu(inter)
    ffn = jnp.dot(inter.astype(bf16), w2_ref[...], preferred_element_type=f32) + b2_ref[...]

    x = _ln(ffn + x, ln2g_ref[...], ln2b_ref[...], eps)

    o_ref[0] = x.astype(o_ref.dtype)


def _pooler_classifier_kernel(x_ref, wp_ref, bp_ref, wc_ref, bc_ref, o_ref):
    x = x_ref[...]                                  # (B, H) f32 (CLS hidden states)
    pooled = jnp.tanh(
        jnp.dot(x.astype(jnp.bfloat16), wp_ref[...], preferred_element_type=jnp.float32)
        + bp_ref[...]
    )
    logits = jnp.dot(pooled.astype(jnp.bfloat16), wc_ref[...],
                     preferred_element_type=jnp.float32) + bc_ref[...]
    o_ref[...] = logits.astype(o_ref.dtype)


# ----------------------------------------------------------------------------
# Pallas-call wrappers
# ----------------------------------------------------------------------------
def embeddings_layernorm(x, gamma2, beta2, eps=1e-12):
    """x: (B, S, H); gamma2/beta2: (1, H). BERT-style LayerNorm over the last dim."""
    B, S, H = x.shape
    return pl.pallas_call(
        functools.partial(_layernorm_kernel, eps=eps),
        out_shape=jax.ShapeDtypeStruct((B, S, H), jnp.float32),
        grid=(B,),
        in_specs=[
            pl.BlockSpec((1, S, H), lambda b: (b, 0, 0)),
            pl.BlockSpec((1, H), lambda b: (0, 0)),
            pl.BlockSpec((1, H), lambda b: (0, 0)),
        ],
        out_specs=pl.BlockSpec((1, S, H), lambda b: (b, 0, 0)),
        compiler_params=pltpu.CompilerParams(dimension_semantics=("parallel",)),
    )(x, gamma2, beta2)


def bert_layer(x, mask_bias, layer, *, num_heads, eps=1e-12):
    """One full BERT encoder layer as a single fused kernel, gridded over batch."""
    B, S, H = x.shape
    I = layer["w1"].shape[1]
    head_dim = H // num_heads

    def full(shape):
        return pl.BlockSpec(shape, lambda b: (0, 0))

    kernel = functools.partial(
        _bert_layer_kernel, num_heads=num_heads, head_dim=head_dim, eps=eps
    )
    return pl.pallas_call(
        kernel,
        out_shape=jax.ShapeDtypeStruct((B, S, H), jnp.float32),
        grid=(B,),
        in_specs=[
            pl.BlockSpec((1, S, H), lambda b: (b, 0, 0)),   # activations
            pl.BlockSpec((1, 1, S), lambda b: (b, 0, 0)),   # additive attention mask
            full((H, 3 * H)), full((1, 3 * H)),             # fused QKV weight / bias
            full((H, H)), full((1, H)),                     # attention output proj
            full((1, H)), full((1, H)),                     # attention LayerNorm g/b
            full((H, I)), full((1, I)),                     # FFN up proj
            full((I, H)), full((1, H)),                     # FFN down proj
            full((1, H)), full((1, H)),                     # FFN LayerNorm g/b
        ],
        out_specs=pl.BlockSpec((1, S, H), lambda b: (b, 0, 0)),
        compiler_params=pltpu.CompilerParams(dimension_semantics=("parallel",)),
    )(
        x, mask_bias,
        layer["wqkv"], layer["bqkv"], layer["wo"], layer["bo"],
        layer["attn_ln_g"], layer["attn_ln_b"],
        layer["w1"], layer["b1"], layer["w2"], layer["b2"],
        layer["ffn_ln_g"], layer["ffn_ln_b"],
    )


def pooler_classifier(cls_hidden, wp, bp, wc, bc):
    """tanh(cls @ Wp + bp) @ Wc + bc, fused so the N=1 store happens exactly once."""
    B, H = cls_hidden.shape
    return pl.pallas_call(
        _pooler_classifier_kernel,
        out_shape=jax.ShapeDtypeStruct((B, 1), jnp.float32),
        grid=(1,),
        in_specs=[
            pl.BlockSpec((B, H), lambda i: (0, 0)),
            pl.BlockSpec((H, H), lambda i: (0, 0)),
            pl.BlockSpec((1, H), lambda i: (0, 0)),
            pl.BlockSpec((H, 1), lambda i: (0, 0)),
            pl.BlockSpec((1, 1), lambda i: (0, 0)),
        ],
        out_specs=pl.BlockSpec((B, 1), lambda i: (0, 0)),
        compiler_params=pltpu.CompilerParams(dimension_semantics=("arbitrary",)),
    )(cls_hidden, wp, bp, wc, bc)


# ----------------------------------------------------------------------------
# Tiny BERT (synthetic, deterministic weights) + classifier head
# ----------------------------------------------------------------------------
CFG = dict(
    vocab_size=100,
    hidden=32,
    num_layers=2,
    num_heads=2,
    intermediate=64,
    max_position=64,
    type_vocab=2,
)


def init_params(key):
    H = CFG["hidden"]
    I = CFG["intermediate"]

    def nrm(key, shape, scale=0.02):
        return scale * jax.random.normal(key, shape, dtype=jnp.float32)

    keys = iter(jax.random.split(key, 64 + 16 * CFG["num_layers"]))
    p = {
        "word_emb": nrm(next(keys), (CFG["vocab_size"], H)),
        "pos_emb": nrm(next(keys), (CFG["max_position"], H)),
        "type_emb": nrm(next(keys), (CFG["type_vocab"], H)),
        "emb_ln_g": jnp.ones((H,), jnp.float32),
        "emb_ln_b": jnp.zeros((H,), jnp.float32),
        "pooler_w": nrm(next(keys), (H, H)),
        "pooler_b": jnp.zeros((H,), jnp.float32),
        "cls_w": nrm(next(keys), (H, 1)),
        "cls_b": jnp.zeros((1,), jnp.float32),
        "layers": [],
    }
    for _ in range(CFG["num_layers"]):
        layer = {
            "wq": nrm(next(keys), (H, H)), "bq": jnp.zeros((H,), jnp.float32),
            "wk": nrm(next(keys), (H, H)), "bk": jnp.zeros((H,), jnp.float32),
            "wv": nrm(next(keys), (H, H)), "bv": jnp.zeros((H,), jnp.float32),
            "wo": nrm(next(keys), (H, H)), "bo": jnp.zeros((H,), jnp.float32),
            "attn_ln_g": jnp.ones((H,), jnp.float32),
            "attn_ln_b": jnp.zeros((H,), jnp.float32),
            "w1": nrm(next(keys), (H, I)), "b1": jnp.zeros((I,), jnp.float32),
            "w2": nrm(next(keys), (I, H)), "b2": jnp.zeros((H,), jnp.float32),
            "ffn_ln_g": jnp.ones((H,), jnp.float32),
            "ffn_ln_b": jnp.zeros((H,), jnp.float32),
        }
        p["layers"].append(layer)
    return p


def fuse_params(p):
    """Fuse QKV weights, cast matmul weights to bf16 (HBM/MXU bandwidth),
    keep biases / LayerNorm params in f32, reshape 1-D params to (1, N)."""
    H = CFG["hidden"]
    I = CFG["intermediate"]
    bf16 = jnp.bfloat16

    fused = {
        "word_emb": p["word_emb"],
        "pos_emb": p["pos_emb"],
        "type_emb": p["type_emb"],
        "emb_ln_g": p["emb_ln_g"].reshape(1, H),
        "emb_ln_b": p["emb_ln_b"].reshape(1, H),
        "pooler_w": p["pooler_w"].astype(bf16),
        "pooler_b": p["pooler_b"].reshape(1, H),
        "cls_w": p["cls_w"].astype(bf16),
        "cls_b": p["cls_b"].reshape(1, 1),
        "layers": [],
    }
    for layer in p["layers"]:
        fused["layers"].append({
            "wqkv": jnp.concatenate([layer["wq"], layer["wk"], layer["wv"]],
                                    axis=1).astype(bf16),              # (H, 3H)
            "bqkv": jnp.concatenate([layer["bq"], layer["bk"], layer["bv"]],
                                    axis=0).reshape(1, 3 * H),
            "wo": layer["wo"].astype(bf16), "bo": layer["bo"].reshape(1, H),
            "attn_ln_g": layer["attn_ln_g"].reshape(1, H),
            "attn_ln_b": layer["attn_ln_b"].reshape(1, H),
            "w1": layer["w1"].astype(bf16), "b1": layer["b1"].reshape(1, I),
            "w2": layer["w2"].astype(bf16), "b2": layer["b2"].reshape(1, H),
            "ffn_ln_g": layer["ffn_ln_g"].reshape(1, H),
            "ffn_ln_b": layer["ffn_ln_b"].reshape(1, H),
        })
    return fused


def bert_classifier_forward(fp, input_ids, token_type_ids, attention_mask):
    B, S = input_ids.shape
    nH = CFG["num_heads"]

    # ----- embeddings (gather is XLA glue; LayerNorm is a Pallas kernel) -----
    positions = jnp.arange(S, dtype=jnp.int32)
    emb = (
        jnp.take(fp["word_emb"], input_ids, axis=0)
        + jnp.take(fp["pos_emb"], positions, axis=0)[None, :, :]
        + jnp.take(fp["type_emb"], token_type_ids, axis=0)
    )                                                                  # (B, S, H)
    x = embeddings_layernorm(emb, fp["emb_ln_g"], fp["emb_ln_b"])

    # HF-style additive mask, kept tiny: (B, 1, S). Broadcast inside the kernel.
    mask_bias = ((1.0 - attention_mask.astype(jnp.float32)) * -10000.0).reshape(B, 1, S)

    # ----- encoder: one fused pallas_call per layer -----
    for layer in fp["layers"]:
        x = bert_layer(x, mask_bias, layer, num_heads=nH)

    # ----- pooler + classifier (fused): tanh(Linear(h[:,0])) -> Linear(.,1) -----
    cls_hidden = x[:, 0, :]                                            # (B, H)
    logits = pooler_classifier(cls_hidden, fp["pooler_w"], fp["pooler_b"],
                               fp["cls_w"], fp["cls_b"])               # (B, 1)
    return logits


if __name__ == "__main__":
    key = jax.random.PRNGKey(0)
    pkey, ikey = jax.random.split(key)

    params = init_params(pkey)
    fused = fuse_params(params)

    B, S = 2, 8
    input_ids = jax.random.randint(ikey, (B, S), 0, CFG["vocab_size"], dtype=jnp.int32)
    token_type_ids = jnp.zeros((B, S), dtype=jnp.int32)
    attention_mask = jnp.ones((B, S), dtype=jnp.int32)

    logits = bert_classifier_forward(fused, input_ids, token_type_ids, attention_mask)
    logits = jax.block_until_ready(logits)

    assert logits.shape == (B, 1), logits.shape
    assert bool(jnp.all(jnp.isfinite(logits)))
    print("KERNEL_OK")
</pallas_src>

<mosaic_0001>
module attributes {stable_mosaic.version = 11 : i64} {
  func.func @_layernorm_kernel(%arg0: i32, %arg1: memref<1x8x32xf32, #tpu.memory_space<vmem>>, %arg2: memref<1x32xf32, #tpu.memory_space<vmem>>, %arg3: memref<1x32xf32, #tpu.memory_space<vmem>>, %arg4: memref<1x8x32xf32, #tpu.memory_space<vmem>>) attributes {dimension_semantics = [#tpu.dimension_semantics<parallel>], iteration_bounds = array<i64: 2>, scalar_prefetch = 0 : i64, scratch_operands = 0 : i64, tpu.core_type = #tpu.core_type<tc>, window_params = [{transform_indices = @transform_0, window_bounds = array<i64: 1, 8, 32>}, {pipeline_mode = #tpu.pipeline_mode<synchronous>, transform_indices = @transform_1, window_bounds = array<i64: 1, 32>}, {pipeline_mode = #tpu.pipeline_mode<synchronous>, transform_indices = @transform_2, window_bounds = array<i64: 1, 32>}, {transform_indices = @transform_3, window_bounds = array<i64: 1, 8, 32>}]} {
    %c0 = arith.constant 0 : index
    %c0_0 = arith.constant 0 : index
    %c0_1 = arith.constant 0 : index
    %0 = vector.load %arg1[%c0, %c0_0, %c0_1] : memref<1x8x32xf32, #tpu.memory_space<vmem>>, vector<1x8x32xf32>
    %1 = vector.shape_cast %0 : vector<1x8x32xf32> to vector<8x32xf32>
    %c0_2 = arith.constant 0 : index
    %c0_3 = arith.constant 0 : index
    %2 = vector.load %arg2[%c0_2, %c0_3] : memref<1x32xf32, #tpu.memory_space<vmem>>, vector<1x32xf32>
    %c0_4 = arith.constant 0 : index
    %c0_5 = arith.constant 0 : index
    %3 = vector.load %arg3[%c0_4, %c0_5] : memref<1x32xf32, #tpu.memory_space<vmem>>, vector<1x32xf32>
    %cst = arith.constant dense<0.000000e+00> : vector<8xf32>
    %4 = vector.multi_reduction <add>, %1, %cst [1] : vector<8x32xf32> to vector<8xf32>
    %5 = vector.shape_cast %4 : vector<8xf32> to vector<8x1xf32>
    %cst_6 = arith.constant 3.200000e+01 : f32
    %6 = vector.broadcast %cst_6 : f32 to vector<8x1xf32>
    %7 = arith.divf %5, %6 : vector<8x1xf32>
    %8 = vector.broadcast %7 : vector<8x1xf32> to vector<8x32xf32>
    %9 = arith.subf %1, %8 : vector<8x32xf32>
    %10 = arith.mulf %9, %9 : vector<8x32xf32>
    %cst_7 = arith.constant dense<0.000000e+00> : vector<8xf32>
    %11 = vector.multi_reduction <add>, %10, %cst_7 [1] : vector<8x32xf32> to vector<8xf32>
    %12 = vector.shape_cast %11 : vector<8xf32> to vector<8x1xf32>
    %cst_8 = arith.constant 3.200000e+01 : f32
    %13 = vector.broadcast %cst_8 : f32 to vector<8x1xf32>
    %14 = arith.divf %12, %13 : vector<8x1xf32>
    %cst_9 = arith.constant 9.99999996E-13 : f32
    %15 = vector.broadcast %cst_9 : f32 to vector<8x1xf32>
    %16 = arith.addf %14, %15 : vector<8x1xf32>
    %17 = math.rsqrt %16 : vector<8x1xf32>
    %18 = vector.broadcast %17 : vector<8x1xf32> to vector<8x32xf32>
    %19 = arith.mulf %9, %18 : vector<8x32xf32>
    %20 = vector.broadcast %2 : vector<1x32xf32> to vector<8x32xf32>
    %21 = arith.mulf %19, %20 : vector<8x32xf32>
    %22 = vector.broadcast %3 : vector<1x32xf32> to vector<8x32xf32>
    %23 = arith.addf %21, %22 : vector<8x32xf32>
    %c0_10 = arith.constant 0 : index
    %c0_11 = arith.constant 0 : index
    %c0_12 = arith.constant 0 : index
    %24 = vector.load %arg4[%c0_10, %c0_11, %c0_12] : memref<1x8x32xf32, #tpu.memory_space<vmem>>, vector<1x8x32xf32>
    %25 = vector.shape_cast %24 : vector<1x8x32xf32> to vector<8x32xf32>
    %26 = vector.shape_cast %23 : vector<8x32xf32> to vector<1x8x32xf32>
    tpu.vector_store %arg4[%c0_10, %c0_11, %c0_12], %26 {strides = array<i32>} : memref<1x8x32xf32, #tpu.memory_space<vmem>>, vector<1x8x32xf32>,
    return
  }
  func.func @transform_0(%arg0: i32) -> (i32, i32, i32) {
    %c0_i32 = arith.constant 0 : i32
    %c0_i32_0 = arith.constant 0 : i32
    %c0_i32_1 = arith.constant 0 : i32
    return %arg0, %c0_i32, %c0_i32_0 : i32, i32, i32
  }
  func.func @transform_1(%arg0: i32) -> (i32, i32) {
    %c0_i32 = arith.constant 0 : i32
    %c0_i32_0 = arith.constant 0 : i32
    %c0_i32_1 = arith.constant 0 : i32
    return %c0_i32, %c0_i32_0 : i32, i32
  }
  func.func @transform_2(%arg0: i32) -> (i32, i32) {
    %c0_i32 = arith.constant 0 : i32
    %c0_i32_0 = arith.constant 0 : i32
    %c0_i32_1 = arith.constant 0 : i32
    return %c0_i32, %c0_i32_0 : i32, i32
  }
  func.func @transform_3(%arg0: i32) -> (i32, i32, i32) {
    %c0_i32 = arith.constant 0 : i32
    %c0_i32_0 = arith.constant 0 : i32
    %c0_i32_1 = arith.constant 0 : i32
    return %arg0, %c0_i32, %c0_i32_0 : i32, i32, i32
  }
}

</mosaic_0001>

<llo_original>
// kernel: tpu_custom_call.1
$region0: #{tpu_custom_call.1}
  #allocation0 [shape = 'u32[]', space=smem, size = 0x4, offset = 0x4, fixed_abs, tag = 'smem constant byte address 0x4 - core index']
  #allocation1 [shape = 'u32[72,128]{1,0:T(1,128)}', space=vmem, size = 0x9000, scoped, tag = 'internal scratch']
  %s0 = inlined_call_operand.hbm [shape: f32[2,8,32], index: 0, kind: input, shape index: {}]
  %s1 = inlined_call_operand.hbm [shape: f32[1,32], index: 1, kind: input, shape index: {}]
  %s2 = inlined_call_operand.vmem [shape: f32[1,32], index: 2, kind: input, shape index: {}]
  %s3 = inlined_call_operand.hbm [shape: f32[2,8,32], index: 3, kind: output, shape index: {}]
  %s4 = sld [smem:[#allocation0]]
  $region53: #{tpu_custom_call.1} parent=0
    _
  %s6 = ssub.s32 1, %s4
  %s7 = scalar_select 0, %s6, %s4
  $region1: #{tpu_custom_call.1} parent=0
    #allocation2 [shape = 'u8[8192]{0}', space=vmem, size = 0x2000, scoped, tag = 'input window, operand 0']
    #allocation3 [shape = 's32[2]{0}', space=sflag, size = 0x8, scoped, tag = 'scoped memory for tpu_custom_call.1']
    #allocation4 [shape = 's32[2]{0}', space=sflag, size = 0x8, scoped, tag = 'scoped memory for tpu_custom_call.1']
    #allocation5 [shape = 'u8[512]{0}', space=vmem, size = 0x400, scoped, tag = 'input window, operand 1, single buffered']
    #allocation6 [shape = 's32[1]{0}', space=sflag, size = 0x4, scoped, tag = 'scoped memory for tpu_custom_call.1']
    #allocation7 [shape = 'u8[8192]{0}', space=vmem, size = 0x2000, scoped, tag = 'output window, operand 0']
    %8 = vsyncpa [#allocation3], 0
    %s9 = scalar_lea.sflag [#allocation3], 1
    %10 = vsyncpa %s9, 0
    %11 = vsyncpa [#allocation6], 0
    %12 = vsyncpa [#allocation4], 0
    %s13 = scalar_lea.sflag [#allocation4], 1
    %14 = vsyncpa %s13, 0
    loop: start=0, step=1, limit=4
    $region2: #{tpu_custom_call.1} parent=1 // loop_pre_header
      _
    $region3: #{tpu_custom_call.1} parent=1 // loop_header
      %s16 = sphi 0, %s20
      %p17 = scmp.ge.s32.totalorder %s16, 4
      %s26 = sphi 0, %s28
      %s29 = sphi 0, %s26
      %s30 = sphi 0, %s29
      %s46 = sphi 0, %s30
      %s50 = sphi 0, %s50
      %s52 = sphi 0, %s50
      %s53 = sphi 0, %s52
      %s67 = sphi 0, %s53
      %s71 = sphi 0, %s71
      %s73 = sphi 0, %s71
      %s74 = sphi 0, %s73
      %s88 = sphi 0, %s74
      %s94 = sphi 0, %s96
      %s97 = sphi 0, %s94
      %s98 = sphi 0, %s97
      %s114 = sphi 0, %s98
    $region4: #{tpu_custom_call.1} parent=1 // loop_header_branch
      %19 = sbr.rel (%p17) target = $region8
    $region5: #{tpu_custom_call.1} parent=1 // loop_body
      %s21 = ssub.s32 %s16, 1
      %s22 = ssub.s32 %s16, 2
      %s23 = sadd.s32 %s16, 1
      %s24 = ssub.s32 %s16, %s23
      %p25 = scmp.eq.s32.totalorder %s24, 0
      %s27 = sadd.s32 %s26, 1
      %s28 = scalar_select %p25, %s26, %s27
      %p31 = pneg %p25
      %p32 = scmp.eq.s32.totalorder %s16, 1
      %p33 = por %p31, %p32
      %p34 = scmp.ne.s32.totalorder %s26, %s29
      %p35 = scmp.eq.s32.totalorder %s16, 0
      %p36 = por %p34, %p35
      %p37 = scmp.ne.s32.totalorder %s26, %s29
      %p38 = scmp.eq.s32.totalorder %s21, 1
      %p39 = por %p37, %p38
      %p40 = scmp.ne.s32.totalorder %s29, %s30
      %p41 = scmp.eq.s32.totalorder %s21, 0
      %p42 = por %p40, %p41
      %p43 = scmp.ne.s32.totalorder %s29, %s30
      %p44 = scmp.eq.s32.totalorder %s22, 1
      %p45 = por %p43, %p44
      %p47 = scmp.ne.s32.totalorder %s30, %s46
      %p48 = scmp.eq.s32.totalorder %s22, 0
      %p49 = por %p47, %p48
      %s51 = sadd.s32 %s50, 1
      %p54 = scmp.eq.s32.totalorder %s16, 1
      %p55 = scmp.ne.s32.totalorder %s50, %s52
      %p56 = scmp.eq.s32.totalorder %s16, 0
      %p57 = por %p55, %p56
      %p58 = scmp.ne.s32.totalorder %s50, %s52
      %p59 = scmp.eq.s32.totalorder %s21, 1
      %p60 = por %p58, %p59
      %p61 = scmp.ne.s32.totalorder %s52, %s53
      %p62 = scmp.eq.s32.totalorder %s21, 0
      %p63 = por %p61, %p62
      %p64 = scmp.ne.s32.totalorder %s52, %s53
      %p65 = scmp.eq.s32.totalorder %s22, 1
      %p66 = por %p64, %p65
      %p68 = scmp.ne.s32.totalorder %s53, %s67
      %p69 = scmp.eq.s32.totalorder %s22, 0
      %p70 = por %p68, %p69
      %s72 = sadd.s32 %s71, 1
      %p75 = scmp.eq.s32.totalorder %s16, 1
      %p76 = scmp.ne.s32.totalorder %s71, %s73
      %p77 = scmp.eq.s32.totalorder %s16, 0
      %p78 = por %p76, %p77
      %p79 = scmp.ne.s32.totalorder %s71, %s73
      %p80 = scmp.eq.s32.totalorder %s21, 1
      %p81 = por %p79, %p80
      %p82 = scmp.ne.s32.totalorder %s73, %s74
      %p83 = scmp.eq.s32.totalorder %s21, 0
      %p84 = por %p82, %p83
      %p85 = scmp.ne.s32.totalorder %s73, %s74
      %p86 = scmp.eq.s32.totalorder %s22, 1
      %p87 = por %p85, %p86
      %p89 = scmp.ne.s32.totalorder %s74, %s88
      %p90 = scmp.eq.s32.totalorder %s22, 0
      %p91 = por %p89, %p90
      %s92 = ssub.s32 %s16, %s23
      %p93 = scmp.eq.s32.totalorder %s92, 0
      %s95 = sadd.s32 %s94, 1
      %s96 = scalar_select %p93, %s94, %s95
      %p99 = pneg %p93
      %p100 = scmp.eq.s32.totalorder %s16, 1
      %p101 = por %p99, %p100
      %p102 = scmp.ne.s32.totalorder %s94, %s97
      %p103 = scmp.eq.s32.totalorder %s16, 0
      %p104 = por %p102, %p103
      %p105 = scmp.ne.s32.totalorder %s94, %s97
      %p106 = scmp.eq.s32.totalorder %s21, 1
      %p107 = por %p105, %p106
      %p108 = scmp.ne.s32.totalorder %s97, %s98
      %p109 = scmp.eq.s32.totalorder %s21, 0
      %p110 = por %p108, %p109
      %p111 = scmp.ne.s32.totalorder %s97, %s98
      %p112 = scmp.eq.s32.totalorder %s22, 1
      %p113 = por %p111, %p112
      %p115 = scmp.ne.s32.totalorder %s98, %s114
      %p116 = scmp.eq.s32.totalorder %s22, 0
      %p117 = por %p115, %p116
      %p118 = scmp.le.s32.totalorder 1, %s16
      %p119 = scmp.lt.s32.totalorder %s16, 3
      %p120 = pnand %p118, %p119
      %p121 = pneg %p120
      // Predicated region
      $region9: #{tpu_custom_call.1} parent=5 // pred_check
        _
      $region10: #{tpu_custom_call.1} parent=5 // pred_check_branch
        %123 = sbr.rel (%p120) target = $region12
      $region11: #{tpu_custom_call.1} parent=5 // pred_region
        %s124 = ssub.s32 %s16, 1
        // Predicated region
        $region13: #{tpu_custom_call.1} parent=11 // pred_check
          %p125 = pneg %p63
        $region14: #{tpu_custom_call.1} parent=11 // pred_check_branch
          %127 = sbr.rel (%p125) target = $region16
        $region15: #{tpu_custom_call.1} parent=11 // pred_region
          %129 = vsyncadd [#allocation6], 0
          %s131 = sshll.u32 %s1, 4
          %s132 = int_to_ptr.hbm [resolvable:$true] %s131
          %s133 = sshll.u32 [#allocation5], 4
          %s134 = int_to_ptr.vmem [resolvable:$true] %s133
          %136 = dma.hbm_to_vmem [thread:$0]  %s132, 16, %s134, [#allocation6]
        $region16: #{tpu_custom_call.1} parent=11 // pred_fallthru
          _
        // Predicated region
        $region17: #{tpu_custom_call.1} parent=11 // pred_check
          %p137 = pneg %p84
        $region18: #{tpu_custom_call.1} parent=11 // pred_check_branch
          %139 = sbr.rel (%p137) target = $region20
        $region19: #{tpu_custom_call.1} parent=11 // pred_region
          _
        $region20: #{tpu_custom_call.1} parent=11 // pred_fallthru
          _
      $region12: #{tpu_custom_call.1} parent=5 // pred_fallthru
        _
      %p140 = scmp.lt.s32.totalorder %s16, 2
      // Predicated region
      $region21: #{tpu_custom_call.1} parent=5 // pred_check
        %p141 = pneg %p140
      $region22: #{tpu_custom_call.1} parent=5 // pred_check_branch
        %143 = sbr.rel (%p141) target = $region24
      $region23: #{tpu_custom_call.1} parent=5 // pred_region
        // Predicated region
        $region25: #{tpu_custom_call.1} parent=23 // pred_check
          %p144 = pneg %p36
        $region26: #{tpu_custom_call.1} parent=23 // pred_check_branch
          %146 = sbr.rel (%p144) target = $region28
        $region27: #{tpu_custom_call.1} parent=23 // pred_region
          %s147 = sand.u32 %s26, 1
          %s148 = scalar_lea.sflag [#allocation3], %s147
          %s149 = sand.u32 %s26, 1
          %s150 = smul.addr %s149, 8
          %s151 = scalar_lea.vmem [#allocation2], %s150
          %153 = vsyncadd %s148, 0
          %s154 = smul.addr %s16, 8
          %s155 = scalar_lea.hbm %s0, %s154
          %s157 = sshll.u32 %s155, 4
          %s158 = int_to_ptr.hbm [resolvable:$true] %s157
          %s159 = sshll.u32 %s151, 4
          %s160 = int_to_ptr.vmem [resolvable:$true] %s159
          %162 = dma.hbm_to_vmem [thread:$0]  %s158, 128, %s160, %s148
        $region28: #{tpu_custom_call.1} parent=23 // pred_fallthru
          _
      $region24: #{tpu_custom_call.1} parent=5 // pred_fallthru
        _
      %p163 = scmp.le.s32.totalorder 1, %s16
      %p164 = scmp.lt.s32.totalorder %s16, 3
      %p165 = pnand %p163, %p164
      %p166 = pneg %p165
      // Predicated region
      $region29: #{tpu_custom_call.1} parent=5 // pred_check
        _
      $region30: #{tpu_custom_call.1} parent=5 // pred_check_branch
        %168 = sbr.rel (%p165) target = $region32
      $region31: #{tpu_custom_call.1} parent=5 // pred_region
        %s169 = ssub.s32 %s16, 1
        %s170 = sand.u32 %s29, 1
        %s171 = scalar_lea.sflag [#allocation3], %s170
        %s172 = sand.u32 %s29, 1
        %s173 = smul.addr %s172, 8
        %s174 = scalar_lea.vmem [#allocation2], %s173
        // Predicated region
        $region33: #{tpu_custom_call.1} parent=31 // pred_check
          %p175 = pneg %p42
        $region34: #{tpu_custom_call.1} parent=31 // pred_check_branch
          %177 = sbr.rel (%p175) target = $region36
        $region35: #{tpu_custom_call.1} parent=31 // pred_region
          %179 = dma.done %s171, 128
        $region36: #{tpu_custom_call.1} parent=31 // pred_fallthru
          _
        // Predicated region
        $region37: #{tpu_custom_call.1} parent=31 // pred_check
          %p180 = pneg %p63
        $region38: #{tpu_custom_call.1} parent=31 // pred_check_branch
          %182 = sbr.rel (%p180) target = $region40
        $region39: #{tpu_custom_call.1} parent=31 // pred_region
          %184 = dma.done [#allocation6], 16
        $region40: #{tpu_custom_call.1} parent=31 // pred_fallthru
          _
        %s185 = sand.u32 %s29, 1
        %s186 = scalar_lea.sflag [#allocation3], %s185
        %s187 = sand.u32 %s29, 1
        %s188 = smul.addr %s187, 8
        %s189 = scalar_lea.vmem [#allocation2], %s188
        %p190 = pneg %p42
        %p191 = pneg %p39
        %p192 = pneg %p63
        %p193 = pneg %p60
        %p194 = pneg %p84
        %p195 = pneg %p81
        %p196 = pneg %p110
        %p197 = pneg %p107
        %s198 = sand.u32 %s97, 1
        %s199 = scalar_lea.sflag [#allocation4], %s198
        %s200 = sand.u32 %s97, 1
        %s201 = smul.addr %s200, 8
        %s202 = scalar_lea.vmem [#allocation7], %s201
        %v203 = vld [vmem:[%s174] sm:$0xff]
        %v204 = vld [vmem:[#allocation5] sm:$0x1]
        %v205 = vld [vmem:[%s2] sm:$0x1]
        %vm206 = vcmask 261120
        %v207 = vsel %vm206, %v203, 0.0
        %208 = vadd.xlane.f32.xlu0 %v207
        %v209 = vpop.xlane.xlu0 %208
        %v210 = vrcp.pop 32.0
        %v211 = vmul.f32 32.0, %v210
        %v212 = vsub.f32 1.0, %v211
        %v213 = vmul.f32 %v210, %v212
        %v214 = vadd.f32 %v210, %v213
        %vm215 = vweird.f32 %v210
        %v216 = vsel %vm215, %v210, %v214
        %v217 = vmul.f32 %v209, %v216
        %v218 = vsub.f32 %v203, %v217
        %v219 = vmul.f32 %v218, %v218
        %v220 = vsel %vm206, %v219, 0.0
        %221 = vadd.xlane.f32.xlu0 %v220
        %v222 = vpop.xlane.xlu0 %221
        %v223 = vmul.f32 %v222, %v216
        %v224 = vadd.f32 %v223, 1e-12
        %v225 = vrsqrt.pop %v224
        %v226 = vmul.f32 %v225, %v224
        %v227 = vmul.f32 %v226, %v225
        %v228 = vmul.f32 0.5, %v227
        %v229 = vsub.f32 1.5, %v228
        %v230 = vmul.f32 %v225, %v229
        %vm231 = vweird.f32 %v224
        %vm232 = vweird.f32 %v225
        %vm233 = vmor %vm231, %vm232
        %v234 = vsel %vm233, %v225, %v230
        %v235 = vmul.f32 %v218, %v234
        %v237 = vperm.slane %v204, 0
        %v239 = vmul.f32 %v235, %v237
        %v241 = vperm.slane %v205, 0
        %v243 = vadd.f32 %v239, %v241
        %244 = vst.msk [vmem:[%s202] sm:$0xff] %vm206, %v243
        %s245 = sand.u32 %s97, 1
        %s246 = scalar_lea.sflag [#allocation4], %s245
        %s247 = sand.u32 %s97, 1
        %s248 = smul.addr %s247, 8
        %s249 = scalar_lea.vmem [#allocation7], %s248
        // Predicated region
        $region41: #{tpu_custom_call.1} parent=31 // pred_check
          %p250 = pneg %p107
        $region42: #{tpu_custom_call.1} parent=31 // pred_check_branch
          %252 = sbr.rel (%p250) target = $region44
        $region43: #{tpu_custom_call.1} parent=31 // pred_region
          %254 = vsyncadd %s246, 0
          %s255 = smul.addr %s21, 8
          %s256 = scalar_lea.hbm %s3, %s255
          %s258 = sshll.u32 %s249, 4
          %s259 = int_to_ptr.vmem [resolvable:$true] %s258
          %s260 = sshll.u32 %s256, 4
          %s261 = int_to_ptr.hbm [resolvable:$true] %s260
          %263 = dma.vmem_to_hbm [thread:$0]  %s259, 128, %s261, %s246
        $region44: #{tpu_custom_call.1} parent=31 // pred_fallthru
          _
      $region32: #{tpu_custom_call.1} parent=5 // pred_fallthru
        _
      %p264 = scmp.le.s32.totalorder 2, %s16
      // Predicated region
      $region45: #{tpu_custom_call.1} parent=5 // pred_check
        %p265 = pneg %p264
      $region46: #{tpu_custom_call.1} parent=5 // pred_check_branch
        %267 = sbr.rel (%p265) target = $region48
      $region47: #{tpu_custom_call.1} parent=5 // pred_region
        %s268 = ssub.s32 %s16, 2
        // Predicated region
        $region49: #{tpu_custom_call.1} parent=47 // pred_check
          %p269 = pneg %p113
        $region50: #{tpu_custom_call.1} parent=47 // pred_check_branch
          %271 = sbr.rel (%p269) target = $region52
        $region51: #{tpu_custom_call.1} parent=47 // pred_region
          %s272 = sand.u32 %s98, 1
          %s273 = scalar_lea.sflag [#allocation4], %s272
          %s274 = sand.u32 %s98, 1
          %s275 = smul.addr %s274, 8
          %s276 = scalar_lea.vmem [#allocation7], %s275
          %278 = dma.done %s273, 128
        $region52: #{tpu_custom_call.1} parent=47 // pred_fallthru
          _
      $region48: #{tpu_custom_call.1} parent=5 // pred_fallthru
        _
    $region6: #{tpu_custom_call.1} parent=1 // loop_footer
      %s20 = sadd.s32 1, %s16
    $region7: #{tpu_custom_call.1} parent=1 // loop_footer_branch
      %15 = sbr.rel target = $region3
    $region8: #{tpu_custom_call.1} parent=1 // loop_exit
      _
    %279 = vsyncpa [#allocation3], 1
    %s280 = scalar_lea.sflag [#allocation3], 1
    %281 = vsyncpa %s280, 1
    %282 = vsyncpa [#allocation6], 1
    %283 = vsyncpa [#allocation4], 1
    %s284 = scalar_lea.sflag [#allocation4], 1
    %285 = vsyncpa %s284, 1

</llo_original>
